<compile_context>
chip_gen: v7x
topology: tpu7x:2x2x1
jax: 0.10.0
libtpu: 0.0.40
codegen_flags: <defaults>
</compile_context>

<pallas_src>
import functools

import jax
import jax.numpy as jnp
from jax.experimental import pallas as pl
from jax.experimental.pallas import tpu as pltpu

LANE = 128


def _round_up(n, m):
    return ((n + m - 1) // m) * m


def _apply_act(y, act, negative_slope):
    if act == "lrelu":
        return jnp.where(y >= 0, y, negative_slope * y)
    if act == "relu":
        return jnp.maximum(y, 0.0)
    if act == "sigmoid":
        return jax.nn.sigmoid(y)
    if act == "tanh":
        return jnp.tanh(y)
    if act == "linear":
        return y
    raise ValueError(f"Unsupported activation: {act}")


def _fused_cat_ae_kernel(x_ref, u_ref, *refs, n_enc_layers, n_dec_layers,
                         latent_dim, act, negative_slope, temperature, epsilon):
    """One batch tile of the full autoencoder forward, fully fused.

    refs = (w0, b0, w1, b1, ..., w_{L-1}, b_{L-1}, recon_ref, p_ref)
    All matmuls: bf16 operands, f32 accumulation (MXU). Epilogues in f32 (VPU/EUP).
    """
    n_layers = n_enc_layers + n_dec_layers
    w_refs = refs[0:2 * n_layers:2]
    b_refs = refs[1:2 * n_layers:2]
    recon_ref = refs[2 * n_layers]
    p_ref = refs[2 * n_layers + 1]

    h = x_ref[...]  # (BT, in_pad) bf16

    # ---- encoder hidden layers: Linear + activation ----
    li = 0
    for _ in range(n_enc_layers - 1):
        y = jnp.dot(h, w_refs[li][...], preferred_element_type=jnp.float32)
        y = y + b_refs[li][...]
        y = _apply_act(y, act, negative_slope)
        h = y.astype(jnp.bfloat16)
        li += 1

    # ---- encoder final layer -> latent logits p (NO activation) ----
    p = jnp.dot(h, w_refs[li][...], preferred_element_type=jnp.float32)
    p = p + b_refs[li][...]
    li += 1
    p_ref[...] = p  # lane-dense (BT, lat_pad) store; padded lanes are exactly 0

    # ---- Gumbel-softmax reparameterization over the (padded) latent dim ----
    bt, lat_pad = p.shape
    lane_ids = jax.lax.broadcasted_iota(jnp.int32, (bt, lat_pad), 1)
    valid = lane_ids < latent_dim
    u = u_ref[...]
    g = -jnp.log(-jnp.log(u + epsilon) + epsilon)          # Gumbel noise (EUP)
    logits = (p + g) * (1.0 / temperature)
    logits = jnp.where(valid, logits, -1e30)                # mask padded lanes
    m = jnp.max(logits, axis=-1, keepdims=True)
    e = jnp.exp(logits - m)
    e = jnp.where(valid, e, 0.0)
    z = e / jnp.sum(e, axis=-1, keepdims=True)
    h = z.astype(jnp.bfloat16)

    # ---- decoder hidden layers: Linear + activation ----
    for _ in range(n_dec_layers - 1):
        y = jnp.dot(h, w_refs[li][...], preferred_element_type=jnp.float32)
        y = y + b_refs[li][...]
        y = _apply_act(y, act, negative_slope)
        h = y.astype(jnp.bfloat16)
        li += 1

    # ---- decoder final layer (NO activation) ----
    y = jnp.dot(h, w_refs[li][...], preferred_element_type=jnp.float32)
    y = y + b_refs[li][...]
    recon_ref[...] = y


def init_autoencoder_params(key, input_dim, hidden_dims, latent_dim):
    """Kaiming-like uniform init matching torch.nn.Linear defaults.

    Returns (enc_params, dec_params), each a list of (W, b) with W stored
    [in_features, out_features] so the kernel computes y = x @ W + b
    (== PyTorch's x @ W_pt.T + b)."""
    def make_layer(k, in_d, out_d):
        kw, kb = jax.random.split(k)
        bound = 1.0 / jnp.sqrt(in_d)
        w = jax.random.uniform(kw, (in_d, out_d), jnp.float32, -bound, bound)
        b = jax.random.uniform(kb, (out_d,), jnp.float32, -bound, bound)
        return w, b

    enc_dims = [input_dim] + list(hidden_dims) + [latent_dim]
    dec_dims = [latent_dim] + list(reversed(hidden_dims)) + [input_dim]
    keys = jax.random.split(key, (len(enc_dims) - 1) + (len(dec_dims) - 1))
    ki = 0
    enc_params, dec_params = [], []
    for i in range(len(enc_dims) - 1):
        enc_params.append(make_layer(keys[ki], enc_dims[i], enc_dims[i + 1]))
        ki += 1
    for i in range(len(dec_dims) - 1):
        dec_params.append(make_layer(keys[ki], dec_dims[i], dec_dims[i + 1]))
        ki += 1
    return enc_params, dec_params


def pack_params(enc_params, dec_params):
    """One-time prep: zero-pad every layer's feature dims to multiples of 128,
    cast W -> bf16, store b as (1, out_pad) f32. Padded lanes stay exactly 0."""
    ws, bs = [], []
    for w, b in list(enc_params) + list(dec_params):
        din, dout = w.shape
        dpi, dpo = _round_up(din, LANE), _round_up(dout, LANE)
        wp = jnp.zeros((dpi, dpo), jnp.bfloat16).at[:din, :dout].set(
            w.astype(jnp.bfloat16))
        bp = jnp.zeros((1, dpo), jnp.float32).at[0, :dout].set(
            b.astype(jnp.float32))
        ws.append(wp)
        bs.append(bp)
    return ws, bs


def categorical_ae_forward(x, u, ws, bs, *, n_enc_layers, input_dim, latent_dim,
                           act="lrelu", negative_slope=0.01, temperature=0.5,
                           epsilon=1e-7, batch_tile=256):
    """Fused forward. Returns (reconstruction, p) like the PyTorch module."""
    batch = x.shape[0]
    n_layers = len(ws)
    n_dec_layers = n_layers - n_enc_layers
    in_pad = ws[0].shape[0]
    lat_pad = ws[n_enc_layers - 1].shape[1]
    out_pad = ws[-1].shape[1]

    # Batch tiling: one "parallel" grid axis; tile capped for v7x VMEM.
    bt = min(_round_up(batch, 8), batch_tile)
    batch_pad = _round_up(batch, bt)

    x_p = jnp.zeros((batch_pad, in_pad), jnp.bfloat16).at[:batch, :input_dim].set(
        x.astype(jnp.bfloat16))
    u_p = jnp.full((batch_pad, lat_pad), 0.5, jnp.float32).at[
        :batch, :latent_dim].set(u.astype(jnp.float32))

    kernel = functools.partial(
        _fused_cat_ae_kernel,
        n_enc_layers=n_enc_layers, n_dec_layers=n_dec_layers,
        latent_dim=latent_dim, act=act, negative_slope=negative_slope,
        temperature=temperature, epsilon=epsilon)

    in_specs = [
        pl.BlockSpec((bt, in_pad), lambda i: (i, 0)),    # x tile
        pl.BlockSpec((bt, lat_pad), lambda i: (i, 0)),   # uniform noise tile
    ]
    flat_params = []
    for w, b in zip(ws, bs):
        # Weights/biases: full-array blocks, constant index -> VMEM-resident
        # across all batch tiles (no re-fetch per tile).
        in_specs.append(pl.BlockSpec(w.shape, lambda i: (0, 0)))
        in_specs.append(pl.BlockSpec(b.shape, lambda i: (0, 0)))
        flat_params.extend([w, b])

    out_specs = [
        pl.BlockSpec((bt, out_pad), lambda i: (i, 0)),   # reconstruction
        pl.BlockSpec((bt, lat_pad), lambda i: (i, 0)),   # latent logits p
    ]
    out_shape = [
        jax.ShapeDtypeStruct((batch_pad, out_pad), jnp.float32),
        jax.ShapeDtypeStruct((batch_pad, lat_pad), jnp.float32),
    ]

    flops = 2 * batch_pad * sum(w.shape[0] * w.shape[1] for w in ws)
    transcendentals = 4 * batch_pad * lat_pad  # 2x log + exp + sigmoid-ish slack
    bytes_accessed = (x_p.size * 2 + u_p.size * 4
                      + sum(w.size * 2 for w in ws)
                      + sum(b.size * 4 for b in bs)
                      + batch_pad * (out_pad + lat_pad) * 4)

    recon_p, p_p = pl.pallas_call(
        kernel,
        out_shape=out_shape,
        grid_spec=pltpu.PrefetchScalarGridSpec(
            num_scalar_prefetch=0,
            grid=(batch_pad // bt,),
            in_specs=in_specs,
            out_specs=out_specs,
        ),
        compiler_params=pltpu.CompilerParams(
            dimension_semantics=("parallel",)),
        cost_estimate=pl.CostEstimate(
            flops=flops, transcendentals=transcendentals,
            bytes_accessed=bytes_accessed),
    )(x_p, u_p, *flat_params)

    return recon_p[:batch, :input_dim], p_p[:batch, :latent_dim]


def reference_forward(x, enc_params, dec_params, u, *, negative_slope=0.01,
                      temperature=0.5, epsilon=1e-7):
    """Pure-JAX f32 mirror of CategoricalAutoencoder.forward (eval mode)."""
    hi = jax.lax.Precision.HIGHEST

    def lrelu(v):
        return jnp.where(v >= 0, v, negative_slope * v)

    h = x
    for i, (w, b) in enumerate(enc_params):
        h = jnp.dot(h, w, precision=hi) + b
        if i != len(enc_params) - 1:
            h = lrelu(h)
    p = h
    g = -jnp.log(-jnp.log(u + epsilon) + epsilon)
    z = jax.nn.softmax((p + g) / temperature, axis=-1)
    h = z
    for i, (w, b) in enumerate(dec_params):
        h = jnp.dot(h, w, precision=hi) + b
        if i != len(dec_params) - 1:
            h = lrelu(h)
    return h, p


if __name__ == "__main__":
    # Small shapes consistent with the module's forward: x is (batch, input_dim).
    batch = 8
    input_dim = 64
    hidden_dims = [32, 16]
    latent_dim = 8
    temperature = 0.5
    negative_slope = 0.01

    key = jax.random.PRNGKey(0)
    k_x, k_p, k_u = jax.random.split(key, 3)
    x = jax.random.normal(k_x, (batch, input_dim), jnp.float32)

    enc_params, dec_params = init_autoencoder_params(
        k_p, input_dim, hidden_dims, latent_dim)
    ws, bs = pack_params(enc_params, dec_params)

    # TODO(synk): torch.nn.Dropout1d (train-mode) is not modeled; forward runs in
    # inference mode (identity). torch.rand_like noise is replaced by these
    # deterministic uniforms (same distribution), consumed inside the kernel.
    u = jax.random.uniform(k_u, (batch, latent_dim), jnp.float32)

    fwd = jax.jit(functools.partial(
        categorical_ae_forward,
        n_enc_layers=len(enc_params), input_dim=input_dim,
        latent_dim=latent_dim, act="lrelu", negative_slope=negative_slope,
        temperature=temperature, epsilon=1e-7))

    recon, p = fwd(x, u, ws, bs)
    recon = jax.block_until_ready(recon)
    p = jax.block_until_ready(p)

    recon_ref, p_ref = reference_forward(
        x, enc_params, dec_params, u,
        negative_slope=negative_slope, temperature=temperature, epsilon=1e-7)

    assert recon.shape == (batch, input_dim)
    assert p.shape == (batch, latent_dim)
    # bf16 MXU operands with f32 accumulation vs f32 reference -> loose tolerance.
    assert jnp.allclose(p, p_ref, atol=5e-2, rtol=5e-2), "p mismatch vs reference"
    assert jnp.allclose(recon, recon_ref, atol=5e-2, rtol=5e-2), \
        "reconstruction mismatch vs reference"

    print("KERNEL_OK")
</pallas_src>

<mosaic_0001>
module attributes {stable_mosaic.version = 11 : i64} {
  func.func @_fused_cat_ae_kernel(%arg0: i32, %arg1: memref<8x128xbf16, #tpu.memory_space<vmem>>, %arg2: memref<8x128xf32, #tpu.memory_space<vmem>>, %arg3: memref<128x128xbf16, #tpu.memory_space<vmem>>, %arg4: memref<1x128xf32, #tpu.memory_space<vmem>>, %arg5: memref<128x128xbf16, #tpu.memory_space<vmem>>, %arg6: memref<1x128xf32, #tpu.memory_space<vmem>>, %arg7: memref<128x128xbf16, #tpu.memory_space<vmem>>, %arg8: memref<1x128xf32, #tpu.memory_space<vmem>>, %arg9: memref<128x128xbf16, #tpu.memory_space<vmem>>, %arg10: memref<1x128xf32, #tpu.memory_space<vmem>>, %arg11: memref<128x128xbf16, #tpu.memory_space<vmem>>, %arg12: memref<1x128xf32, #tpu.memory_space<vmem>>, %arg13: memref<128x128xbf16, #tpu.memory_space<vmem>>, %arg14: memref<1x128xf32, #tpu.memory_space<vmem>>, %arg15: memref<8x128xf32, #tpu.memory_space<vmem>>, %arg16: memref<8x128xf32, #tpu.memory_space<vmem>>) attributes {dimension_semantics = [#tpu.dimension_semantics<parallel>], iteration_bounds = array<i64: 1>, scalar_prefetch = 0 : i64, scratch_operands = 0 : i64, tpu.core_type = #tpu.core_type<tc>, window_params = [{transform_indices = @transform_0, window_bounds = array<i64: 8, 128>}, {transform_indices = @transform_1, window_bounds = array<i64: 8, 128>}, {pipeline_mode = #tpu.pipeline_mode<synchronous>, transform_indices = @transform_2, window_bounds = array<i64: 128, 128>}, {pipeline_mode = #tpu.pipeline_mode<synchronous>, transform_indices = @transform_3, window_bounds = array<i64: 1, 128>}, {pipeline_mode = #tpu.pipeline_mode<synchronous>, transform_indices = @transform_4, window_bounds = array<i64: 128, 128>}, {pipeline_mode = #tpu.pipeline_mode<synchronous>, transform_indices = @transform_5, window_bounds = array<i64: 1, 128>}, {pipeline_mode = #tpu.pipeline_mode<synchronous>, transform_indices = @transform_6, window_bounds = array<i64: 128, 128>}, {pipeline_mode = #tpu.pipeline_mode<synchronous>, transform_indices = @transform_7, window_bounds = array<i64: 1, 128>}, {pipeline_mode = #tpu.pipeline_mode<synchronous>, transform_indices = @transform_8, window_bounds = array<i64: 128, 128>}, {pipeline_mode = #tpu.pipeline_mode<synchronous>, transform_indices = @transform_9, window_bounds = array<i64: 1, 128>}, {pipeline_mode = #tpu.pipeline_mode<synchronous>, transform_indices = @transform_10, window_bounds = array<i64: 128, 128>}, {pipeline_mode = #tpu.pipeline_mode<synchronous>, transform_indices = @transform_11, window_bounds = array<i64: 1, 128>}, {pipeline_mode = #tpu.pipeline_mode<synchronous>, transform_indices = @transform_12, window_bounds = array<i64: 128, 128>}, {pipeline_mode = #tpu.pipeline_mode<synchronous>, transform_indices = @transform_13, window_bounds = array<i64: 1, 128>}, {transform_indices = @transform_14, window_bounds = array<i64: 8, 128>}, {transform_indices = @transform_15, window_bounds = array<i64: 8, 128>}]} {
    %c0 = arith.constant 0 : index
    %c0_0 = arith.constant 0 : index
    %0 = vector.load %arg1[%c0, %c0_0] : memref<8x128xbf16, #tpu.memory_space<vmem>>, vector<8x128xbf16>
    %c0_1 = arith.constant 0 : index
    %c0_2 = arith.constant 0 : index
    %1 = vector.load %arg3[%c0_1, %c0_2] : memref<128x128xbf16, #tpu.memory_space<vmem>>, vector<128x128xbf16>
    %cst = arith.constant dense<0.000000e+00> : vector<8x128xf32>
    %2 = tpu.matmul %0, %1, %cst {dimension_numbers = #tpu.dot_dimension_numbers<[1], [0], [0], [1], [0, 0, 1, 1], [], []>} : vector<8x128xbf16>, vector<128x128xbf16>, vector<8x128xf32> -> vector<8x128xf32>
    %c0_3 = arith.constant 0 : index
    %c0_4 = arith.constant 0 : index
    %3 = vector.load %arg4[%c0_3, %c0_4] : memref<1x128xf32, #tpu.memory_space<vmem>>, vector<1x128xf32>
    %4 = vector.broadcast %3 : vector<1x128xf32> to vector<8x128xf32>
    %5 = arith.addf %2, %4 : vector<8x128xf32>
    %cst_5 = arith.constant 0.000000e+00 : f32
    %6 = vector.broadcast %cst_5 : f32 to vector<8x128xf32>
    %7 = arith.cmpf oge, %5, %6 : vector<8x128xf32>
    %cst_6 = arith.constant 0.00999999977 : f32
    %8 = vector.broadcast %cst_6 : f32 to vector<8x128xf32>
    %9 = arith.mulf %8, %5 : vector<8x128xf32>
    %10 = arith.select %7, %5, %9 : vector<8x128xi1>, vector<8x128xf32>
    %11 = arith.truncf %10 : vector<8x128xf32> to vector<8x128xbf16>
    %c0_7 = arith.constant 0 : index
    %c0_8 = arith.constant 0 : index
    %12 = vector.load %arg5[%c0_7, %c0_8] : memref<128x128xbf16, #tpu.memory_space<vmem>>, vector<128x128xbf16>
    %cst_9 = arith.constant dense<0.000000e+00> : vector<8x128xf32>
    %13 = tpu.matmul %11, %12, %cst_9 {dimension_numbers = #tpu.dot_dimension_numbers<[1], [0], [0], [1], [0, 0, 1, 1], [], []>} : vector<8x128xbf16>, vector<128x128xbf16>, vector<8x128xf32> -> vector<8x128xf32>
    %c0_10 = arith.constant 0 : index
    %c0_11 = arith.constant 0 : index
    %14 = vector.load %arg6[%c0_10, %c0_11] : memref<1x128xf32, #tpu.memory_space<vmem>>, vector<1x128xf32>
    %15 = vector.broadcast %14 : vector<1x128xf32> to vector<8x128xf32>
    %16 = arith.addf %13, %15 : vector<8x128xf32>
    %cst_12 = arith.constant 0.000000e+00 : f32
    %17 = vector.broadcast %cst_12 : f32 to vector<8x128xf32>
    %18 = arith.cmpf oge, %16, %17 : vector<8x128xf32>
    %cst_13 = arith.constant 0.00999999977 : f32
    %19 = vector.broadcast %cst_13 : f32 to vector<8x128xf32>
    %20 = arith.mulf %19, %16 : vector<8x128xf32>
    %21 = arith.select %18, %16, %20 : vector<8x128xi1>, vector<8x128xf32>
    %22 = arith.truncf %21 : vector<8x128xf32> to vector<8x128xbf16>
    %c0_14 = arith.constant 0 : index
    %c0_15 = arith.constant 0 : index
    %23 = vector.load %arg7[%c0_14, %c0_15] : memref<128x128xbf16, #tpu.memory_space<vmem>>, vector<128x128xbf16>
    %cst_16 = arith.constant dense<0.000000e+00> : vector<8x128xf32>
    %24 = tpu.matmul %22, %23, %cst_16 {dimension_numbers = #tpu.dot_dimension_numbers<[1], [0], [0], [1], [0, 0, 1, 1], [], []>} : vector<8x128xbf16>, vector<128x128xbf16>, vector<8x128xf32> -> vector<8x128xf32>
    %c0_17 = arith.constant 0 : index
    %c0_18 = arith.constant 0 : index
    %25 = vector.load %arg8[%c0_17, %c0_18] : memref<1x128xf32, #tpu.memory_space<vmem>>, vector<1x128xf32>
    %26 = vector.broadcast %25 : vector<1x128xf32> to vector<8x128xf32>
    %27 = arith.addf %24, %26 : vector<8x128xf32>
    %c0_19 = arith.constant 0 : index
    %c0_20 = arith.constant 0 : index
    %28 = vector.load %arg16[%c0_19, %c0_20] : memref<8x128xf32, #tpu.memory_space<vmem>>, vector<8x128xf32>
    tpu.vector_store %arg16[%c0_19, %c0_20], %27 {strides = array<i32>} : memref<8x128xf32, #tpu.memory_space<vmem>>, vector<8x128xf32>,
    %29 = tpu.iota {dimensions = array<i32: 1>} : vector<8x128xi32>
    %c8_i32 = arith.constant 8 : i32
    %30 = vector.broadcast %c8_i32 : i32 to vector<8x128xi32>
    %31 = arith.cmpi slt, %29, %30 : vector<8x128xi32>
    %c0_21 = arith.constant 0 : index
    %c0_22 = arith.constant 0 : index
    %32 = vector.load %arg2[%c0_21, %c0_22] : memref<8x128xf32, #tpu.memory_space<vmem>>, vector<8x128xf32>
    %cst_23 = arith.constant 1.000000e-07 : f32
    %33 = vector.broadcast %cst_23 : f32 to vector<8x128xf32>
    %34 = arith.addf %32, %33 : vector<8x128xf32>
    %35 = math.log %34 : vector<8x128xf32>
    %cst_24 = arith.constant 0.000000e+00 : f32
    %36 = vector.broadcast %cst_24 : f32 to vector<8x128xf32>
    %37 = arith.subf %36, %35 : vector<8x128xf32>
    %cst_25 = arith.constant 1.000000e-07 : f32
    %38 = vector.broadcast %cst_25 : f32 to vector<8x128xf32>
    %39 = arith.addf %37, %38 : vector<8x128xf32>
    %40 = math.log %39 : vector<8x128xf32>
    %cst_26 = arith.constant 0.000000e+00 : f32
    %41 = vector.broadcast %cst_26 : f32 to vector<8x128xf32>
    %42 = arith.subf %41, %40 : vector<8x128xf32>
    %43 = arith.addf %27, %42 : vector<8x128xf32>
    %cst_27 = arith.constant 2.000000e+00 : f32
    %44 = vector.broadcast %cst_27 : f32 to vector<8x128xf32>
    %45 = arith.mulf %43, %44 : vector<8x128xf32>
    %cst_28 = arith.constant -1.000000e+30 : f32
    %46 = vector.broadcast %cst_28 : f32 to vector<8x128xf32>
    %47 = arith.select %31, %45, %46 : vector<8x128xi1>, vector<8x128xf32>
    %cst_29 = arith.constant dense<0xFF800000> : vector<8xf32>
    %48 = vector.multi_reduction <maximumf>, %47, %cst_29 [1] : vector<8x128xf32> to vector<8xf32>
    %49 = vector.shape_cast %48 : vector<8xf32> to vector<8x1xf32>
    %50 = vector.broadcast %49 : vector<8x1xf32> to vector<8x128xf32>
    %51 = arith.subf %47, %50 : vector<8x128xf32>
    %52 = math.exp %51 : vector<8x128xf32>
    %cst_30 = arith.constant 0.000000e+00 : f32
    %53 = vector.broadcast %cst_30 : f32 to vector<8x128xf32>
    %54 = arith.select %31, %52, %53 : vector<8x128xi1>, vector<8x128xf32>
    %cst_31 = arith.constant dense<0.000000e+00> : vector<8xf32>
    %55 = vector.multi_reduction <add>, %54, %cst_31 [1] : vector<8x128xf32> to vector<8xf32>
    %56 = vector.shape_cast %55 : vector<8xf32> to vector<8x1xf32>
    %57 = vector.broadcast %56 : vector<8x1xf32> to vector<8x128xf32>
    %58 = arith.divf %54, %57 : vector<8x128xf32>
    %59 = arith.truncf %58 : vector<8x128xf32> to vector<8x128xbf16>
    %c0_32 = arith.constant 0 : index
    %c0_33 = arith.constant 0 : index
    %60 = vector.load %arg9[%c0_32, %c0_33] : memref<128x128xbf16, #tpu.memory_space<vmem>>, vector<128x128xbf16>
    %cst_34 = arith.constant dense<0.000000e+00> : vector<8x128xf32>
    %61 = tpu.matmul %59, %60, %cst_34 {dimension_numbers = #tpu.dot_dimension_numbers<[1], [0], [0], [1], [0, 0, 1, 1], [], []>} : vector<8x128xbf16>, vector<128x128xbf16>, vector<8x128xf32> -> vector<8x128xf32>
    %c0_35 = arith.constant 0 : index
    %c0_36 = arith.constant 0 : index
    %62 = vector.load %arg10[%c0_35, %c0_36] : memref<1x128xf32, #tpu.memory_space<vmem>>, vector<1x128xf32>
    %63 = vector.broadcast %62 : vector<1x128xf32> to vector<8x128xf32>
    %64 = arith.addf %61, %63 : vector<8x128xf32>
    %cst_37 = arith.constant 0.000000e+00 : f32
    %65 = vector.broadcast %cst_37 : f32 to vector<8x128xf32>
    %66 = arith.cmpf oge, %64, %65 : vector<8x128xf32>
    %cst_38 = arith.constant 0.00999999977 : f32
    %67 = vector.broadcast %cst_38 : f32 to vector<8x128xf32>
    %68 = arith.mulf %67, %64 : vector<8x128xf32>
    %69 = arith.select %66, %64, %68 : vector<8x128xi1>, vector<8x128xf32>
    %70 = arith.truncf %69 : vector<8x128xf32> to vector<8x128xbf16>
    %c0_39 = arith.constant 0 : index
    %c0_40 = arith.constant 0 : index
    %71 = vector.load %arg11[%c0_39, %c0_40] : memref<128x128xbf16, #tpu.memory_space<vmem>>, vector<128x128xbf16>
    %cst_41 = arith.constant dense<0.000000e+00> : vector<8x128xf32>
    %72 = tpu.matmul %70, %71, %cst_41 {dimension_numbers = #tpu.dot_dimension_numbers<[1], [0], [0], [1], [0, 0, 1, 1], [], []>} : vector<8x128xbf16>, vector<128x128xbf16>, vector<8x128xf32> -> vector<8x128xf32>
    %c0_42 = arith.constant 0 : index
    %c0_43 = arith.constant 0 : index
    %73 = vector.load %arg12[%c0_42, %c0_43] : memref<1x128xf32, #tpu.memory_space<vmem>>, vector<1x128xf32>
    %74 = vector.broadcast %73 : vector<1x128xf32> to vector<8x128xf32>
    %75 = arith.addf %72, %74 : vector<8x128xf32>
    %cst_44 = arith.constant 0.000000e+00 : f32
    %76 = vector.broadcast %cst_44 : f32 to vector<8x128xf32>
    %77 = arith.cmpf oge, %75, %76 : vector<8x128xf32>
    %cst_45 = arith.constant 0.00999999977 : f32
    %78 = vector.broadcast %cst_45 : f32 to vector<8x128xf32>
    %79 = arith.mulf %78, %75 : vector<8x128xf32>
    %80 = arith.select %77, %75, %79 : vector<8x128xi1>, vector<8x128xf32>
    %81 = arith.truncf %80 : vector<8x128xf32> to vector<8x128xbf16>
    %c0_46 = arith.constant 0 : index
    %c0_47 = arith.constant 0 : index
    %82 = vector.load %arg13[%c0_46, %c0_47] : memref<128x128xbf16, #tpu.memory_space<vmem>>, vector<128x128xbf16>
    %cst_48 = arith.constant dense<0.000000e+00> : vector<8x128xf32>
    %83 = tpu.matmul %81, %82, %cst_48 {dimension_numbers = #tpu.dot_dimension_numbers<[1], [0], [0], [1], [0, 0, 1, 1], [], []>} : vector<8x128xbf16>, vector<128x128xbf16>, vector<8x128xf32> -> vector<8x128xf32>
    %c0_49 = arith.constant 0 : index
    %c0_50 = arith.constant 0 : index
    %84 = vector.load %arg14[%c0_49, %c0_50] : memref<1x128xf32, #tpu.memory_space<vmem>>, vector<1x128xf32>
    %85 = vector.broadcast %84 : vector<1x128xf32> to vector<8x128xf32>
    %86 = arith.addf %83, %85 : vector<8x128xf32>
    %c0_51 = arith.constant 0 : index
    %c0_52 = arith.constant 0 : index
    %87 = vector.load %arg15[%c0_51, %c0_52] : memref<8x128xf32, #tpu.memory_space<vmem>>, vector<8x128xf32>
    tpu.vector_store %arg15[%c0_51, %c0_52], %86 {strides = array<i32>} : memref<8x128xf32, #tpu.memory_space<vmem>>, vector<8x128xf32>,
    return
  }
  func.func @transform_0(%arg0: i32) -> (i32, i32) {
    %c0_i32 = arith.constant 0 : i32
    %c0_i32_0 = arith.constant 0 : i32
    return %arg0, %c0_i32 : i32, i32
  }
  func.func @transform_1(%arg0: i32) -> (i32, i32) {
    %c0_i32 = arith.constant 0 : i32
    %c0_i32_0 = arith.constant 0 : i32
    return %arg0, %c0_i32 : i32, i32
  }
  func.func @transform_2(%arg0: i32) -> (i32, i32) {
    %c0_i32 = arith.constant 0 : i32
    %c0_i32_0 = arith.constant 0 : i32
    %c0_i32_1 = arith.constant 0 : i32
    return %c0_i32, %c0_i32_0 : i32, i32
  }
  func.func @transform_3(%arg0: i32) -> (i32, i32) {
    %c0_i32 = arith.constant 0 : i32
    %c0_i32_0 = arith.constant 0 : i32
    %c0_i32_1 = arith.constant 0 : i32
    return %c0_i32, %c0_i32_0 : i32, i32
  }
  func.func @transform_4(%arg0: i32) -> (i32, i32) {
    %c0_i32 = arith.constant 0 : i32
    %c0_i32_0 = arith.constant 0 : i32
    %c0_i32_1 = arith.constant 0 : i32
    return %c0_i32, %c0_i32_0 : i32, i32
  }
  func.func @transform_5(%arg0: i32) -> (i32, i32) {
    %c0_i32 = arith.constant 0 : i32
    %c0_i32_0 = arith.constant 0 : i32
    %c0_i32_1 = arith.constant 0 : i32
    return %c0_i32, %c0_i32_0 : i32, i32
  }
  func.func @transform_6(%arg0: i32) -> (i32, i32) {
    %c0_i32 = arith.constant 0 : i32
    %c0_i32_0 = arith.constant 0 : i32
    %c0_i32_1 = arith.constant 0 : i32
    return %c0_i32, %c0_i32_0 : i32, i32
  }
  func.func @transform_7(%arg0: i32) -> (i32, i32) {
    %c0_i32 = arith.constant 0 : i32
    %c0_i32_0 = arith.constant 0 : i32
    %c0_i32_1 = arith.constant 0 : i32
    return %c0_i32, %c0_i32_0 : i32, i32
  }
  func.func @transform_8(%arg0: i32) -> (i32, i32) {
    %c0_i32 = arith.constant 0 : i32
    %c0_i32_0 = arith.constant 0 : i32
    %c0_i32_1 = arith.constant 0 : i32
    return %c0_i32, %c0_i32_0 : i32, i32
  }
  func.func @transform_9(%arg0: i32) -> (i32, i32) {
    %c0_i32 = arith.constant 0 : i32
    %c0_i32_0 = arith.constant 0 : i32
    %c0_i32_1 = arith.constant 0 : i32
    return %c0_i32, %c0_i32_0 : i32, i32
  }
  func.func @transform_10(%arg0: i32) -> (i32, i32) {
    %c0_i32 = arith.constant 0 : i32
    %c0_i32_0 = arith.constant 0 : i32
    %c0_i32_1 = arith.constant 0 : i32
    return %c0_i32, %c0_i32_0 : i32, i32
  }
  func.func @transform_11(%arg0: i32) -> (i32, i32) {
    %c0_i32 = arith.constant 0 : i32
    %c0_i32_0 = arith.constant 0 : i32
    %c0_i32_1 = arith.constant 0 : i32
    return %c0_i32, %c0_i32_0 : i32, i32
  }
  func.func @transform_12(%arg0: i32) -> (i32, i32) {
    %c0_i32 = arith.constant 0 : i32
    %c0_i32_0 = arith.constant 0 : i32
    %c0_i32_1 = arith.constant 0 : i32
    return %c0_i32, %c0_i32_0 : i32, i32
  }
  func.func @transform_13(%arg0: i32) -> (i32, i32) {
    %c0_i32 = arith.constant 0 : i32
    %c0_i32_0 = arith.constant 0 : i32
    %c0_i32_1 = arith.constant 0 : i32
    return %c0_i32, %c0_i32_0 : i32, i32
  }
  func.func @transform_14(%arg0: i32) -> (i32, i32) {
    %c0_i32 = arith.constant 0 : i32
    %c0_i32_0 = arith.constant 0 : i32
    return %arg0, %c0_i32 : i32, i32
  }
  func.func @transform_15(%arg0: i32) -> (i32, i32) {
    %c0_i32 = arith.constant 0 : i32
    %c0_i32_0 = arith.constant 0 : i32
    return %arg0, %c0_i32 : i32, i32
  }
}

</mosaic_0001>

<llo_original>
// kernel: categorical_ae_forward.1
$region0: #{categorical_ae_forward.1}
  #allocation0 [shape = 'u32[]', space=smem, size = 0x4, offset = 0x4, fixed_abs, tag = 'smem constant byte address 0x4 - core index']
  #allocation1 [shape = 'u32[144,128]{1,0:T(1,128)}', space=vmem, size = 0x12000, scoped, tag = 'internal scratch']
  %s0 = inlined_call_operand.vmem [shape: bf16[8,128], index: 0, kind: input, shape index: {}]
  %s1 = inlined_call_operand.vmem [shape: f32[8,128], index: 1, kind: input, shape index: {}]
  %s2 = inlined_call_operand.vmem [shape: bf16[128,128], index: 2, kind: input, shape index: {}]
  %s3 = inlined_call_operand.vmem [shape: f32[1,128], index: 3, kind: input, shape index: {}]
  %s4 = inlined_call_operand.hbm [shape: bf16[128,128], index: 4, kind: input, shape index: {}]
  %s5 = inlined_call_operand.vmem [shape: f32[1,128], index: 5, kind: input, shape index: {}]
  %s6 = inlined_call_operand.hbm [shape: bf16[128,128], index: 6, kind: input, shape index: {}]
  %s7 = inlined_call_operand.vmem [shape: f32[1,128], index: 7, kind: input, shape index: {}]
  %s8 = inlined_call_operand.hbm [shape: bf16[128,128], index: 8, kind: input, shape index: {}]
  %s9 = inlined_call_operand.vmem [shape: f32[1,128], index: 9, kind: input, shape index: {}]
  %s10 = inlined_call_operand.hbm [shape: bf16[128,128], index: 10, kind: input, shape index: {}]
  %s11 = inlined_call_operand.vmem [shape: f32[1,128], index: 11, kind: input, shape index: {}]
  %s12 = inlined_call_operand.hbm [shape: bf16[128,128], index: 12, kind: input, shape index: {}]
  %s13 = inlined_call_operand.vmem [shape: f32[1,128], index: 13, kind: input, shape index: {}]
  %s14 = inlined_call_operand.hbm [shape: f32[8,128], index: 14, kind: output, shape index: {0}]
  %s15 = inlined_call_operand.hbm [shape: f32[8,128], index: 15, kind: output, shape index: {1}]
  %16 = xla_tuple %s14, %s15
  %s17 = sld [smem:[#allocation0]]
  $region94: #{categorical_ae_forward.1} parent=0
    _
  %s19 = ssub.s32 1, %s17
  %s20 = scalar_select 0, %s19, %s17
  $region1: #{categorical_ae_forward.1} parent=0
    #allocation2 [shape = 'u8[32768]{0}', space=vmem, size = 0x8000, scoped, tag = 'input window, operand 4, single buffered']
    #allocation3 [shape = 's32[1]{0}', space=sflag, size = 0x4, scoped, tag = 'scoped memory for categorical_ae_forward.1']
    #allocation4 [shape = 's32[1]{0}', space=sflag, size = 0x4, scoped, tag = 'scoped memory for categorical_ae_forward.1']
    #allocation5 [shape = 'u8[32768]{0}', space=vmem, size = 0x8000, scoped, tag = 'input window, operand 6, single buffered']
    #allocation6 [shape = 's32[1]{0}', space=sflag, size = 0x4, scoped, tag = 'scoped memory for categorical_ae_forward.1']
    #allocation7 [shape = 'u8[32768]{0}', space=vmem, size = 0x8000, scoped, tag = 'input window, operand 8, single buffered']
    #allocation8 [shape = 'u8[32768]{0}', space=vmem, size = 0x8000, scoped, tag = 'input window, operand 10, single buffered']
    #allocation9 [shape = 's32[1]{0}', space=sflag, size = 0x4, scoped, tag = 'scoped memory for categorical_ae_forward.1']
    #allocation10 [shape = 'u8[32768]{0}', space=vmem, size = 0x8000, scoped, tag = 'input window, operand 12, single buffered']
    #allocation11 [shape = 'u8[4096]{0}', space=vmem, size = 0x1000, scoped, tag = 'output window, operand 0, single buffered']
    #allocation12 [shape = 'u8[4096]{0}', space=vmem, size = 0x1000, scoped, tag = 'output window, operand 1, single buffered']
    #allocation13 [shape = 's32[1]{0}', space=sflag, size = 0x4, scoped, tag = 'scoped memory for categorical_ae_forward.1']
    %21 = vsyncpa [#allocation3], 0
    %22 = vsyncpa [#allocation6], 0
    %23 = vsyncpa [#allocation9], 0
    %24 = vsyncpa [#allocation4], 0
    %25 = vsyncpa [#allocation13], 0
    // Predicated region
    $region2: #{categorical_ae_forward.1} parent=1 // pred_check
      _
    $region3: #{categorical_ae_forward.1} parent=1 // pred_check_branch
      %27 = sbr.rel (0) target = $region5
    $region4: #{categorical_ae_forward.1} parent=1 // pred_region
      _
    $region5: #{categorical_ae_forward.1} parent=1 // pred_fallthru
      _
    // Predicated region
    $region6: #{categorical_ae_forward.1} parent=1 // pred_check
      _
    $region7: #{categorical_ae_forward.1} parent=1 // pred_check_branch
      %29 = sbr.rel (0) target = $region9
    $region8: #{categorical_ae_forward.1} parent=1 // pred_region
      _
    $region9: #{categorical_ae_forward.1} parent=1 // pred_fallthru
      _
    // Predicated region
    $region10: #{categorical_ae_forward.1} parent=1 // pred_check
      _
    $region11: #{categorical_ae_forward.1} parent=1 // pred_check_branch
      %31 = sbr.rel (0) target = $region13
    $region12: #{categorical_ae_forward.1} parent=1 // pred_region
      _
    $region13: #{categorical_ae_forward.1} parent=1 // pred_fallthru
      _
    // Predicated region
    $region14: #{categorical_ae_forward.1} parent=1 // pred_check
      _
    $region15: #{categorical_ae_forward.1} parent=1 // pred_check_branch
      %33 = sbr.rel (0) target = $region17
    $region16: #{categorical_ae_forward.1} parent=1 // pred_region
      _
    $region17: #{categorical_ae_forward.1} parent=1 // pred_fallthru
      _
    // Predicated region
    $region18: #{categorical_ae_forward.1} parent=1 // pred_check
      _
    $region19: #{categorical_ae_forward.1} parent=1 // pred_check_branch
      %35 = sbr.rel (0) target = $region21
    $region20: #{categorical_ae_forward.1} parent=1 // pred_region
      %s37 = ssub.s32 1024, 1024
      %38 = vsyncadd [#allocation3], %s37
      %s39 = sshll.u32 [#allocation2], 4
      %s40 = int_to_ptr.vmem [resolvable:$true] %s39
      %45 = dma.hbm_to_vmem [thread:$0]  %s4, 1024, %s40, [#allocation3], 64, 64, 4
    $region21: #{categorical_ae_forward.1} parent=1 // pred_fallthru
      _
    // Predicated region
    $region22: #{categorical_ae_forward.1} parent=1 // pred_check
      _
    $region23: #{categorical_ae_forward.1} parent=1 // pred_check_branch
      %47 = sbr.rel (0) target = $region25
    $region24: #{categorical_ae_forward.1} parent=1 // pred_region
      _
    $region25: #{categorical_ae_forward.1} parent=1 // pred_fallthru
      _
    // Predicated region
    $region26: #{categorical_ae_forward.1} parent=1 // pred_check
      _
    $region27: #{categorical_ae_forward.1} parent=1 // pred_check_branch
      %49 = sbr.rel (0) target = $region29
    $region28: #{categorical_ae_forward.1} parent=1 // pred_region
      %s51 = ssub.s32 1024, 1024
      %52 = vsyncadd [#allocation6], %s51
      %s53 = sshll.u32 [#allocation5], 4
      %s54 = int_to_ptr.vmem [resolvable:$true] %s53
      %59 = dma.hbm_to_vmem [thread:$0]  %s6, 1024, %s54, [#allocation6], 64, 64, 4
    $region29: #{categorical_ae_forward.1} parent=1 // pred_fallthru
      _
    // Predicated region
    $region30: #{categorical_ae_forward.1} parent=1 // pred_check
      _
    $region31: #{categorical_ae_forward.1} parent=1 // pred_check_branch
      %61 = sbr.rel (0) target = $region33
    $region32: #{categorical_ae_forward.1} parent=1 // pred_region
      _
    $region33: #{categorical_ae_forward.1} parent=1 // pred_fallthru
      _
    // Predicated region
    $region34: #{categorical_ae_forward.1} parent=1 // pred_check
      _
    $region35: #{categorical_ae_forward.1} parent=1 // pred_check_branch
      %63 = sbr.rel (0) target = $region37
    $region36: #{categorical_ae_forward.1} parent=1 // pred_region
      %s65 = ssub.s32 1024, 1024
      %66 = vsyncadd [#allocation6], %s65
      %s67 = sshll.u32 [#allocation7], 4
      %s68 = int_to_ptr.vmem [resolvable:$true] %s67
      %73 = dma.hbm_to_vmem [thread:$0]  %s8, 1024, %s68, [#allocation6], 64, 64, 4
    $region37: #{categorical_ae_forward.1} parent=1 // pred_fallthru
      _
    // Predicated region
    $region38: #{categorical_ae_forward.1} parent=1 // pred_check
      _
    $region39: #{categorical_ae_forward.1} parent=1 // pred_check_branch
      %75 = sbr.rel (0) target = $region41
    $region40: #{categorical_ae_forward.1} parent=1 // pred_region
      _
    $region41: #{categorical_ae_forward.1} parent=1 // pred_fallthru
      _
    // Predicated region
    $region42: #{categorical_ae_forward.1} parent=1 // pred_check
      _
    $region43: #{categorical_ae_forward.1} parent=1 // pred_check_branch
      %77 = sbr.rel (0) target = $region45
    $region44: #{categorical_ae_forward.1} parent=1 // pred_region
      %s79 = ssub.s32 1024, 1024
      %80 = vsyncadd [#allocation9], %s79
      %s81 = sshll.u32 [#allocation8], 4
      %s82 = int_to_ptr.vmem [resolvable:$true] %s81
      %87 = dma.hbm_to_vmem [thread:$0]  %s10, 1024, %s82, [#allocation9], 64, 64, 4
    $region45: #{categorical_ae_forward.1} parent=1 // pred_fallthru
      _
    // Predicated region
    $region46: #{categorical_ae_forward.1} parent=1 // pred_check
      _
    $region47: #{categorical_ae_forward.1} parent=1 // pred_check_branch
      %89 = sbr.rel (0) target = $region49
    $region48: #{categorical_ae_forward.1} parent=1 // pred_region
      _
    $region49: #{categorical_ae_forward.1} parent=1 // pred_fallthru
      _
    // Predicated region
    $region50: #{categorical_ae_forward.1} parent=1 // pred_check
      _
    $region51: #{categorical_ae_forward.1} parent=1 // pred_check_branch
      %91 = sbr.rel (0) target = $region53
    $region52: #{categorical_ae_forward.1} parent=1 // pred_region
      %s93 = ssub.s32 1024, 1024
      %94 = vsyncadd [#allocation9], %s93
      %s95 = sshll.u32 [#allocation10], 4
      %s96 = int_to_ptr.vmem [resolvable:$true] %s95
      %101 = dma.hbm_to_vmem [thread:$0]  %s12, 1024, %s96, [#allocation9], 64, 64, 4
    $region53: #{categorical_ae_forward.1} parent=1 // pred_fallthru
      _
    // Predicated region
    $region54: #{categorical_ae_forward.1} parent=1 // pred_check
      _
    $region55: #{categorical_ae_forward.1} parent=1 // pred_check_branch
      %103 = sbr.rel (0) target = $region57
    $region56: #{categorical_ae_forward.1} parent=1 // pred_region
      _
    $region57: #{categorical_ae_forward.1} parent=1 // pred_fallthru
      _
    // Predicated region
    $region58: #{categorical_ae_forward.1} parent=1 // pred_check
      _
    $region59: #{categorical_ae_forward.1} parent=1 // pred_check_branch
      %105 = sbr.rel (0) target = $region61
    $region60: #{categorical_ae_forward.1} parent=1 // pred_region
      %106 = dma.done [#allocation3], 1024
    $region61: #{categorical_ae_forward.1} parent=1 // pred_fallthru
      _
    // Predicated region
    $region62: #{categorical_ae_forward.1} parent=1 // pred_check
      _
    $region63: #{categorical_ae_forward.1} parent=1 // pred_check_branch
      %108 = sbr.rel (0) target = $region65
    $region64: #{categorical_ae_forward.1} parent=1 // pred_region
      %109 = dma.done [#allocation6], 1024
    $region65: #{categorical_ae_forward.1} parent=1 // pred_fallthru
      _
    // Predicated region
    $region66: #{categorical_ae_forward.1} parent=1 // pred_check
      _
    $region67: #{categorical_ae_forward.1} parent=1 // pred_check_branch
      %111 = sbr.rel (0) target = $region69
    $region68: #{categorical_ae_forward.1} parent=1 // pred_region
      %112 = dma.done [#allocation6], 1024
    $region69: #{categorical_ae_forward.1} parent=1 // pred_fallthru
      _
    // Predicated region
    $region70: #{categorical_ae_forward.1} parent=1 // pred_check
      _
    $region71: #{categorical_ae_forward.1} parent=1 // pred_check_branch
      %114 = sbr.rel (0) target = $region73
    $region72: #{categorical_ae_forward.1} parent=1 // pred_region
      %115 = dma.done [#allocation9], 1024
    $region73: #{categorical_ae_forward.1} parent=1 // pred_fallthru
      _
    // Predicated region
    $region74: #{categorical_ae_forward.1} parent=1 // pred_check
      _
    $region75: #{categorical_ae_forward.1} parent=1 // pred_check_branch
      %117 = sbr.rel (0) target = $region77
    $region76: #{categorical_ae_forward.1} parent=1 // pred_region
      %118 = dma.done [#allocation9], 1024
    $region77: #{categorical_ae_forward.1} parent=1 // pred_fallthru
      _
    %v120 = vld [vmem:[%s0] sm:$0xf]
    %v121 = vld [vmem:[%s2] sm:$0xf]
    %v122 = vld [vmem:[%s2 + $0x4] sm:$0xf]
    %v123 = vld [vmem:[%s2 + $0x8] sm:$0xf]
    %v124 = vld [vmem:[%s2 + $0xc] sm:$0xf]
    %v125 = vld [vmem:[%s2 + $0x10] sm:$0xf]
    %v126 = vld [vmem:[%s2 + $0x14] sm:$0xf]
    %v127 = vld [vmem:[%s2 + $0x18] sm:$0xf]
    %v128 = vld [vmem:[%s2 + $0x1c] sm:$0xf]
    %v129 = vld [vmem:[%s2 + $0x20] sm:$0xf]
    %v130 = vld [vmem:[%s2 + $0x24] sm:$0xf]
    %v131 = vld [vmem:[%s2 + $0x28] sm:$0xf]
    %v132 = vld [vmem:[%s2 + $0x2c] sm:$0xf]
    %v133 = vld [vmem:[%s2 + $0x30] sm:$0xf]
    %v134 = vld [vmem:[%s2 + $0x34] sm:$0xf]
    %v135 = vld [vmem:[%s2 + $0x38] sm:$0xf]
    %v136 = vld [vmem:[%s2 + $0x3c] sm:$0xf]
    %v137 = vld [vmem:[%s3] sm:$0x1]
    %v139 = vlaneseq
    %v140 = vshrl.u32 %v139, 7
    %v141 = vsub.s32 0, %v140
    %v142 = vrot.slane %v137, %v141
    %v160 = vunpack.c.l.b16 %v121
    %v161 = vunpack.c.l.b16 %v122
    %v162 = vunpack.c.l.b16 %v123
    %v163 = vunpack.c.l.b16 %v124
    %v164 = vunpack.c.l.b16 %v125
    %v165 = vunpack.c.l.b16 %v126
    %v166 = vunpack.c.l.b16 %v127
    %v167 = vunpack.c.l.b16 %v128
    %v168 = vunpack.c.l.b16 %v129
    %v169 = vunpack.c.l.b16 %v130
    %v170 = vunpack.c.l.b16 %v131
    %v171 = vunpack.c.l.b16 %v132
    %v172 = vunpack.c.l.b16 %v133
    %v173 = vunpack.c.l.b16 %v134
    %v174 = vunpack.c.l.b16 %v135
    %v175 = vunpack.c.l.b16 %v136
    %v176 = vpack.c.b16 %v161, %v160
    %v177 = vpack.c.b16 %v163, %v162
    %v178 = vpack.c.b16 %v165, %v164
    %v179 = vpack.c.b16 %v167, %v166
    %v180 = vpack.c.b16 %v169, %v168
    %v181 = vpack.c.b16 %v171, %v170
    %v182 = vpack.c.b16 %v173, %v172
    %v183 = vpack.c.b16 %v175, %v174
    %192 = vmatprep.subr.bf16.mxu0 0
    %193 = vmatpush1.bf16.msra.mxu0 %v176
    %194 = vmatprep.subr.bf16.mxu0 0
    %195 = vmatpush1.bf16.msra.mxu0 %v177
    %196 = vmatprep.subr.bf16.mxu0 0
    %197 = vmatpush1.bf16.msra.mxu0 %v178
    %198 = vmatprep.subr.bf16.mxu0 0
    %199 = vmatpush1.bf16.msra.mxu0 %v179
    %200 = vmatprep.subr.bf16.mxu0 0
    %201 = vmatpush1.bf16.msra.mxu0 %v180
    %202 = vmatprep.subr.bf16.mxu0 0
    %203 = vmatpush1.bf16.msra.mxu0 %v181
    %204 = vmatprep.subr.bf16.mxu0 0
    %205 = vmatpush1.bf16.msra.mxu0 %v182
    %206 = vmatprep.subr.bf16.mxu0 0
    %207 = vmatpush1.bf16.msra.mxu0 %v183
    %208 = vmatprep.subr.bf16.mxu0 0
    %209 = vmatpush1.bf16.msra.mxu0 0
    %210 = vmatprep.subr.bf16.mxu0 0
    %211 = vmatpush1.bf16.msra.mxu0 0
    %212 = vmatprep.subr.bf16.mxu0 0
    %213 = vmatpush1.bf16.msra.mxu0 0
    %214 = vmatprep.subr.bf16.mxu0 0
    %215 = vmatpush1.bf16.msra.mxu0 0
    %216 = vmatprep.subr.bf16.mxu0 0
    %217 = vmatpush1.bf16.msra.mxu0 0
    %218 = vmatprep.subr.bf16.mxu0 0
    %219 = vmatpush1.bf16.msra.mxu0 0
    %220 = vmatprep.subr.bf16.mxu0 0
    %221 = vmatpush1.bf16.msra.mxu0 0
    %222 = vmatprep.subr.bf16.mxu0 0
    %223 = vmatpush1.bf16.msra.mxu0 0
    %224 = vmatprep.mubr.bf16.mxu0 0
    %225 = vmatmul.mubr.bf16.gmra.mrb[0].mxu0 %v120
    %v226 = vpop.f32.mrb[0].mxu0
    %v227 = vadd.f32 %v142, %v226
    %v228 = vpop.f32.mrb[0].mxu0
    %v229 = vpop.f32.mrb[0].mxu0
    %v230 = vpop.f32.mrb[0].mxu0
    %231 = vdwg.mxu0
    %vm232 = vcmp.ge.f32.partialorder %v227, 0.0
    %v233 = vmul.f32 %v227, 0.01
    %v234 = vsel %vm232, %v227, %v233
    %v235 = vpack.c.bf16 %v234, %v234
    %v236 = vld [vmem:[#allocation2] sm:$0xf]
    %v237 = vld [vmem:[#allocation2 + $0x4] sm:$0xf]
    %v238 = vld [vmem:[#allocation2 + $0x8] sm:$0xf]
    %v239 = vld [vmem:[#allocation2 + $0xc] sm:$0xf]
    %v240 = vld [vmem:[#allocation2 + $0x10] sm:$0xf]
    %v241 = vld [vmem:[#allocation2 + $0x14] sm:$0xf]
    %v242 = vld [vmem:[#allocation2 + $0x18] sm:$0xf]
    %v243 = vld [vmem:[#allocation2 + $0x1c] sm:$0xf]
    %v244 = vld [vmem:[#allocation2 + $0x20] sm:$0xf]
    %v245 = vld [vmem:[#allocation2 + $0x24] sm:$0xf]
    %v246 = vld [vmem:[#allocation2 + $0x28] sm:$0xf]
    %v247 = vld [vmem:[#allocation2 + $0x2c] sm:$0xf]
    %v248 = vld [vmem:[#allocation2 + $0x30] sm:$0xf]
    %v249 = vld [vmem:[#allocation2 + $0x34] sm:$0xf]
    %v250 = vld [vmem:[#allocation2 + $0x38] sm:$0xf]
    %v251 = vld [vmem:[#allocation2 + $0x3c] sm:$0xf]
    %v252 = vld [vmem:[%s5] sm:$0x1]
    %v254 = vlaneseq
    %v255 = vshrl.u32 %v254, 7
    %v256 = vsub.s32 0, %v255
    %v257 = vrot.slane %v252, %v256
    %v275 = vunpack.c.l.b16 %v236
    %v276 = vunpack.c.l.b16 %v237
    %v277 = vunpack.c.l.b16 %v238
    %v278 = vunpack.c.l.b16 %v239
    %v279 = vunpack.c.l.b16 %v240
    %v280 = vunpack.c.l.b16 %v241
    %v281 = vunpack.c.l.b16 %v242
    %v282 = vunpack.c.l.b16 %v243
    %v283 = vunpack.c.l.b16 %v244
    %v284 = vunpack.c.l.b16 %v245
    %v285 = vunpack.c.l.b16 %v246
    %v286 = vunpack.c.l.b16 %v247
    %v287 = vunpack.c.l.b16 %v248
    %v288 = vunpack.c.l.b16 %v249
    %v289 = vunpack.c.l.b16 %v250
    %v290 = vunpack.c.l.b16 %v251
    %v291 = vpack.c.b16 %v276, %v275
    %v292 = vpack.c.b16 %v278, %v277
    %v293 = vpack.c.b16 %v280, %v279
    %v294 = vpack.c.b16 %v282, %v281
    %v295 = vpack.c.b16 %v284, %v283
    %v296 = vpack.c.b16 %v286, %v285
    %v297 = vpack.c.b16 %v288, %v287
    %v298 = vpack.c.b16 %v290, %v289
    %307 = vmatprep.subr.bf16.mxu0 0
    %308 = vmatpush1.bf16.msra.mxu0 %v291
    %309 = vmatprep.subr.bf16.mxu0 0
    %310 = vmatpush1.bf16.msra.mxu0 %v292
    %311 = vmatprep.subr.bf16.mxu0 0
    %312 = vmatpush1.bf16.msra.mxu0 %v293
    %313 = vmatprep.subr.bf16.mxu0 0
    %314 = vmatpush1.bf16.msra.mxu0 %v294
    %315 = vmatprep.subr.bf16.mxu0 0
    %316 = vmatpush1.bf16.msra.mxu0 %v295
    %317 = vmatprep.subr.bf16.mxu0 0
    %318 = vmatpush1.bf16.msra.mxu0 %v296
    %319 = vmatprep.subr.bf16.mxu0 0
    %320 = vmatpush1.bf16.msra.mxu0 %v297
    %321 = vmatprep.subr.bf16.mxu0 0
    %322 = vmatpush1.bf16.msra.mxu0 %v298
    %323 = vmatprep.subr.bf16.mxu0 0
    %324 = vmatpush1.bf16.msra.mxu0 0
    %325 = vmatprep.subr.bf16.mxu0 0
    %326 = vmatpush1.bf16.msra.mxu0 0
    %327 = vmatprep.subr.bf16.mxu0 0
    %328 = vmatpush1.bf16.msra.mxu0 0
    %329 = vmatprep.subr.bf16.mxu0 0
    %330 = vmatpush1.bf16.msra.mxu0 0
    %331 = vmatprep.subr.bf16.mxu0 0
    %332 = vmatpush1.bf16.msra.mxu0 0
    %333 = vmatprep.subr.bf16.mxu0 0
    %334 = vmatpush1.bf16.msra.mxu0 0
    %335 = vmatprep.subr.bf16.mxu0 0
    %336 = vmatpush1.bf16.msra.mxu0 0
    %337 = vmatprep.subr.bf16.mxu0 0
    %338 = vmatpush1.bf16.msra.mxu0 0
    %339 = vmatprep.mubr.bf16.mxu0 0
    %340 = vmatmul.mubr.bf16.gmra.mrb[0].mxu0 %v235
    %v341 = vpop.f32.mrb[0].mxu0
    %v342 = vadd.f32 %v257, %v341
    %v343 = vpop.f32.mrb[0].mxu0
    %v344 = vpop.f32.mrb[0].mxu0
    %v345 = vpop.f32.mrb[0].mxu0
    %346 = vdwg.mxu0
    %vm347 = vcmp.ge.f32.partialorder %v342, 0.0
    %v348 = vmul.f32 %v342, 0.01
    %v349 = vsel %vm347, %v342, %v348
    %v350 = vpack.c.bf16 %v349, %v349
    %v351 = vld [vmem:[#allocation5] sm:$0xf]
    %v352 = vld [vmem:[#allocation5 + $0x4] sm:$0xf]
    %v353 = vld [vmem:[#allocation5 + $0x8] sm:$0xf]
    %v354 = vld [vmem:[#allocation5 + $0xc] sm:$0xf]
    %v355 = vld [vmem:[#allocation5 + $0x10] sm:$0xf]
    %v356 = vld [vmem:[#allocation5 + $0x14] sm:$0xf]
    %v357 = vld [vmem:[#allocation5 + $0x18] sm:$0xf]
    %v358 = vld [vmem:[#allocation5 + $0x1c] sm:$0xf]
    %v359 = vld [vmem:[#allocation5 + $0x20] sm:$0xf]
    %v360 = vld [vmem:[#allocation5 + $0x24] sm:$0xf]
    %v361 = vld [vmem:[#allocation5 + $0x28] sm:$0xf]
    %v362 = vld [vmem:[#allocation5 + $0x2c] sm:$0xf]
    %v363 = vld [vmem:[#allocation5 + $0x30] sm:$0xf]
    %v364 = vld [vmem:[#allocation5 + $0x34] sm:$0xf]
    %v365 = vld [vmem:[#allocation5 + $0x38] sm:$0xf]
    %v366 = vld [vmem:[#allocation5 + $0x3c] sm:$0xf]
    %v367 = vld [vmem:[%s7] sm:$0x1]
    %v369 = vlaneseq
    %v370 = vshrl.u32 %v369, 7
    %v371 = vsub.s32 0, %v370
    %v372 = vrot.slane %v367, %v371
    %v390 = vunpack.c.l.b16 %v351
    %v391 = vunpack.c.l.b16 %v352
    %v392 = vunpack.c.l.b16 %v353
    %v393 = vunpack.c.l.b16 %v354
    %v394 = vunpack.c.l.b16 %v355
    %v395 = vunpack.c.l.b16 %v356
    %v396 = vunpack.c.l.b16 %v357
    %v397 = vunpack.c.l.b16 %v358
    %v398 = vunpack.c.l.b16 %v359
    %v399 = vunpack.c.l.b16 %v360
    %v400 = vunpack.c.l.b16 %v361
    %v401 = vunpack.c.l.b16 %v362
    %v402 = vunpack.c.l.b16 %v363
    %v403 = vunpack.c.l.b16 %v364
    %v404 = vunpack.c.l.b16 %v365
    %v405 = vunpack.c.l.b16 %v366
    %v406 = vpack.c.b16 %v391, %v390
    %v407 = vpack.c.b16 %v393, %v392
    %v408 = vpack.c.b16 %v395, %v394
    %v409 = vpack.c.b16 %v397, %v396
    %v410 = vpack.c.b16 %v399, %v398
    %v411 = vpack.c.b16 %v401, %v400
    %v412 = vpack.c.b16 %v403, %v402
    %v413 = vpack.c.b16 %v405, %v404
    %422 = vmatprep.subr.bf16.mxu0 0
    %423 = vmatpush1.bf16.msra.mxu0 %v406
    %424 = vmatprep.subr.bf16.mxu0 0
    %425 = vmatpush1.bf16.msra.mxu0 %v407
    %426 = vmatprep.subr.bf16.mxu0 0
    %427 = vmatpush1.bf16.msra.mxu0 %v408
    %428 = vmatprep.subr.bf16.mxu0 0
    %429 = vmatpush1.bf16.msra.mxu0 %v409
    %430 = vmatprep.subr.bf16.mxu0 0
    %431 = vmatpush1.bf16.msra.mxu0 %v410
    %432 = vmatprep.subr.bf16.mxu0 0
    %433 = vmatpush1.bf16.msra.mxu0 %v411
    %434 = vmatprep.subr.bf16.mxu0 0
    %435 = vmatpush1.bf16.msra.mxu0 %v412
    %436 = vmatprep.subr.bf16.mxu0 0
    %437 = vmatpush1.bf16.msra.mxu0 %v413
    %438 = vmatprep.subr.bf16.mxu0 0
    %439 = vmatpush1.bf16.msra.mxu0 0
    %440 = vmatprep.subr.bf16.mxu0 0
    %441 = vmatpush1.bf16.msra.mxu0 0
    %442 = vmatprep.subr.bf16.mxu0 0
    %443 = vmatpush1.bf16.msra.mxu0 0
    %444 = vmatprep.subr.bf16.mxu0 0
    %445 = vmatpush1.bf16.msra.mxu0 0
    %446 = vmatprep.subr.bf16.mxu0 0
    %447 = vmatpush1.bf16.msra.mxu0 0
    %448 = vmatprep.subr.bf16.mxu0 0
    %449 = vmatpush1.bf16.msra.mxu0 0
    %450 = vmatprep.subr.bf16.mxu0 0
    %451 = vmatpush1.bf16.msra.mxu0 0
    %452 = vmatprep.subr.bf16.mxu0 0
    %453 = vmatpush1.bf16.msra.mxu0 0
    %454 = vmatprep.mubr.bf16.mxu0 0
    %455 = vmatmul.mubr.bf16.gmra.mrb[0].mxu0 %v350
    %v456 = vpop.f32.mrb[0].mxu0
    %v457 = vadd.f32 %v372, %v456
    %v458 = vpop.f32.mrb[0].mxu0
    %v459 = vpop.f32.mrb[0].mxu0
    %v460 = vpop.f32.mrb[0].mxu0
    %461 = vdwg.mxu0
    %462 = vst [vmem:[#allocation12] sm:$0xff] %v457
    %v463 = vlaneseq
    %v464 = vand.u32 %v463, 127
    %vm465 = vcmp.lt.s32.totalorder %v464, 8
    %v466 = vld [vmem:[%s1] sm:$0xff]
    %v467 = vadd.f32 %v466, 1e-07
    %v468 = vlog2.pop %v467
    %v469 = vmul.f32 %v468, 0.6931472
    %v470 = vsub.f32 0.0, %v469
    %v471 = vadd.f32 %v470, 1e-07
    %v472 = vlog2.pop %v471
    %v473 = vmul.f32 %v472, 0.6931472
    %v474 = vsub.f32 0.0, %v473
    %v475 = vadd.f32 %v457, %v474
    %v476 = vmul.f32 %v475, 2.0
    %v477 = vsel %vm465, %v476, -1e+30
    %478 = vmax.xlane.f32.xlu0 %v477
    %v479 = vpop.xlane.xlu0 %478
    %v480 = vsub.f32 %v477, %v479
    %v481 = vmul.f32 %v480, 1.442695
    %v482 = vpow.pop %v481
    %v483 = vsel %vm465, %v482, 0.0
    %484 = vadd.xlane.f32.xlu0 %v483
    %v485 = vpop.xlane.xlu0 %484
    %v486 = vrcp.pop %v485
    %v487 = vmul.f32 %v483, %v486
    %v488 = vpack.c.bf16 %v487, %v487
    %v489 = vld [vmem:[#allocation7] sm:$0xf]
    %v490 = vld [vmem:[#allocation7 + $0x4] sm:$0xf]
    %v491 = vld [vmem:[#allocation7 + $0x8] sm:$0xf]
    %v492 = vld [vmem:[#allocation7 + $0xc] sm:$0xf]
    %v493 = vld [vmem:[#allocation7 + $0x10] sm:$0xf]
    %v494 = vld [vmem:[#allocation7 + $0x14] sm:$0xf]
    %v495 = vld [vmem:[#allocation7 + $0x18] sm:$0xf]
    %v496 = vld [vmem:[#allocation7 + $0x1c] sm:$0xf]
    %v497 = vld [vmem:[#allocation7 + $0x20] sm:$0xf]
    %v498 = vld [vmem:[#allocation7 + $0x24] sm:$0xf]
    %v499 = vld [vmem:[#allocation7 + $0x28] sm:$0xf]
    %v500 = vld [vmem:[#allocation7 + $0x2c] sm:$0xf]
    %v501 = vld [vmem:[#allocation7 + $0x30] sm:$0xf]
    %v502 = vld [vmem:[#allocation7 + $0x34] sm:$0xf]
    %v503 = vld [vmem:[#allocation7 + $0x38] sm:$0xf]
    %v504 = vld [vmem:[#allocation7 + $0x3c] sm:$0xf]
    %v505 = vld [vmem:[%s9] sm:$0x1]
    %v507 = vlaneseq
    %v508 = vshrl.u32 %v507, 7
    %v509 = vsub.s32 0, %v508
    %v510 = vrot.slane %v505, %v509
    %v528 = vunpack.c.l.b16 %v489
    %v529 = vunpack.c.l.b16 %v490
    %v530 = vunpack.c.l.b16 %v491
    %v531 = vunpack.c.l.b16 %v492
    %v532 = vunpack.c.l.b16 %v493
    %v533 = vunpack.c.l.b16 %v494
    %v534 = vunpack.c.l.b16 %v495
    %v535 = vunpack.c.l.b16 %v496
    %v536 = vunpack.c.l.b16 %v497
    %v537 = vunpack.c.l.b16 %v498
    %v538 = vunpack.c.l.b16 %v499
    %v539 = vunpack.c.l.b16 %v500
    %v540 = vunpack.c.l.b16 %v501
    %v541 = vunpack.c.l.b16 %v502
    %v542 = vunpack.c.l.b16 %v503
    %v543 = vunpack.c.l.b16 %v504
    %v544 = vpack.c.b16 %v529, %v528
    %v545 = vpack.c.b16 %v531, %v530
    %v546 = vpack.c.b16 %v533, %v532
    %v547 = vpack.c.b16 %v535, %v534
    %v548 = vpack.c.b16 %v537, %v536
    %v549 = vpack.c.b16 %v539, %v538
    %v550 = vpack.c.b16 %v541, %v540
    %v551 = vpack.c.b16 %v543, %v542
    %560 = vmatprep.subr.bf16.mxu0 0
    %561 = vmatpush1.bf16.msra.mxu0 %v544
    %562 = vmatprep.subr.bf16.mxu0 0
    %563 = vmatpush1.bf16.msra.mxu0 %v545
    %564 = vmatprep.subr.bf16.mxu0 0
    %565 = vmatpush1.bf16.msra.mxu0 %v546
    %566 = vmatprep.subr.bf16.mxu0 0
    %567 = vmatpush1.bf16.msra.mxu0 %v547
    %568 = vmatprep.subr.bf16.mxu0 0
    %569 = vmatpush1.bf16.msra.mxu0 %v548
    %570 = vmatprep.subr.bf16.mxu0 0
    %571 = vmatpush1.bf16.msra.mxu0 %v549
    %572 = vmatprep.subr.bf16.mxu0 0
    %573 = vmatpush1.bf16.msra.mxu0 %v550
    %574 = vmatprep.subr.bf16.mxu0 0
    %575 = vmatpush1.bf16.msra.mxu0 %v551
    %576 = vmatprep.subr.bf16.mxu0 0
    %577 = vmatpush1.bf16.msra.mxu0 0
    %578 = vmatprep.subr.bf16.mxu0 0
    %579 = vmatpush1.bf16.msra.mxu0 0
    %580 = vmatprep.subr.bf16.mxu0 0
    %581 = vmatpush1.bf16.msra.mxu0 0
    %582 = vmatprep.subr.bf16.mxu0 0
    %583 = vmatpush1.bf16.msra.mxu0 0
    %584 = vmatprep.subr.bf16.mxu0 0
    %585 = vmatpush1.bf16.msra.mxu0 0
    %586 = vmatprep.subr.bf16.mxu0 0
    %587 = vmatpush1.bf16.msra.mxu0 0
    %588 = vmatprep.subr.bf16.mxu0 0
    %589 = vmatpush1.bf16.msra.mxu0 0
    %590 = vmatprep.subr.bf16.mxu0 0
    %591 = vmatpush1.bf16.msra.mxu0 0
    %592 = vmatprep.mubr.bf16.mxu0 0
    %593 = vmatmul.mubr.bf16.gmra.mrb[0].mxu0 %v488
    %v594 = vpop.f32.mrb[0].mxu0
    %v595 = vadd.f32 %v510, %v594
    %v596 = vpop.f32.mrb[0].mxu0
    %v597 = vpop.f32.mrb[0].mxu0
    %v598 = vpop.f32.mrb[0].mxu0
    %599 = vdwg.mxu0
    %vm600 = vcmp.ge.f32.partialorder %v595, 0.0
    %v601 = vmul.f32 %v595, 0.01
    %v602 = vsel %vm600, %v595, %v601
    %v603 = vpack.c.bf16 %v602, %v602
    %v604 = vld [vmem:[#allocation8] sm:$0xf]
    %v605 = vld [vmem:[#allocation8 + $0x4] sm:$0xf]
    %v606 = vld [vmem:[#allocation8 + $0x8] sm:$0xf]
    %v607 = vld [vmem:[#allocation8 + $0xc] sm:$0xf]
    %v608 = vld [vmem:[#allocation8 + $0x10] sm:$0xf]
    %v609 = vld [vmem:[#allocation8 + $0x14] sm:$0xf]
    %v610 = vld [vmem:[#allocation8 + $0x18] sm:$0xf]
    %v611 = vld [vmem:[#allocation8 + $0x1c] sm:$0xf]
    %v612 = vld [vmem:[#allocation8 + $0x20] sm:$0xf]
    %v613 = vld [vmem:[#allocation8 + $0x24] sm:$0xf]
    %v614 = vld [vmem:[#allocation8 + $0x28] sm:$0xf]
    %v615 = vld [vmem:[#allocation8 + $0x2c] sm:$0xf]
    %v616 = vld [vmem:[#allocation8 + $0x30] sm:$0xf]
    %v617 = vld [vmem:[#allocation8 + $0x34] sm:$0xf]
    %v618 = vld [vmem:[#allocation8 + $0x38] sm:$0xf]
    %v619 = vld [vmem:[#allocation8 + $0x3c] sm:$0xf]
    %v620 = vld [vmem:[%s11] sm:$0x1]
    %v622 = vlaneseq
    %v623 = vshrl.u32 %v622, 7
    %v624 = vsub.s32 0, %v623
    %v625 = vrot.slane %v620, %v624
    %v643 = vunpack.c.l.b16 %v604
    %v644 = vunpack.c.l.b16 %v605
    %v645 = vunpack.c.l.b16 %v606
    %v646 = vunpack.c.l.b16 %v607
    %v647 = vunpack.c.l.b16 %v608
    %v648 = vunpack.c.l.b16 %v609
    %v649 = vunpack.c.l.b16 %v610
    %v650 = vunpack.c.l.b16 %v611
    %v651 = vunpack.c.l.b16 %v612
    %v652 = vunpack.c.l.b16 %v613
    %v653 = vunpack.c.l.b16 %v614
    %v654 = vunpack.c.l.b16 %v615
    %v655 = vunpack.c.l.b16 %v616
    %v656 = vunpack.c.l.b16 %v617
    %v657 = vunpack.c.l.b16 %v618
    %v658 = vunpack.c.l.b16 %v619
    %v659 = vpack.c.b16 %v644, %v643
    %v660 = vpack.c.b16 %v646, %v645
    %v661 = vpack.c.b16 %v648, %v647
    %v662 = vpack.c.b16 %v650, %v649
    %v663 = vpack.c.b16 %v652, %v651
    %v664 = vpack.c.b16 %v654, %v653
    %v665 = vpack.c.b16 %v656, %v655
    %v666 = vpack.c.b16 %v658, %v657
    %675 = vmatprep.subr.bf16.mxu0 0
    %676 = vmatpush1.bf16.msra.mxu0 %v659
    %677 = vmatprep.subr.bf16.mxu0 0
    %678 = vmatpush1.bf16.msra.mxu0 %v660
    %679 = vmatprep.subr.bf16.mxu0 0
    %680 = vmatpush1.bf16.msra.mxu0 %v661
    %681 = vmatprep.subr.bf16.mxu0 0
    %682 = vmatpush1.bf16.msra.mxu0 %v662
    %683 = vmatprep.subr.bf16.mxu0 0
    %684 = vmatpush1.bf16.msra.mxu0 %v663
    %685 = vmatprep.subr.bf16.mxu0 0
    %686 = vmatpush1.bf16.msra.mxu0 %v664
    %687 = vmatprep.subr.bf16.mxu0 0
    %688 = vmatpush1.bf16.msra.mxu0 %v665
    %689 = vmatprep.subr.bf16.mxu0 0
    %690 = vmatpush1.bf16.msra.mxu0 %v666
    %691 = vmatprep.subr.bf16.mxu0 0
    %692 = vmatpush1.bf16.msra.mxu0 0
    %693 = vmatprep.subr.bf16.mxu0 0
    %694 = vmatpush1.bf16.msra.mxu0 0
    %695 = vmatprep.subr.bf16.mxu0 0
    %696 = vmatpush1.bf16.msra.mxu0 0
    %697 = vmatprep.subr.bf16.mxu0 0
    %698 = vmatpush1.bf16.msra.mxu0 0
    %699 = vmatprep.subr.bf16.mxu0 0
    %700 = vmatpush1.bf16.msra.mxu0 0
    %701 = vmatprep.subr.bf16.mxu0 0
    %702 = vmatpush1.bf16.msra.mxu0 0
    %703 = vmatprep.subr.bf16.mxu0 0
    %704 = vmatpush1.bf16.msra.mxu0 0
    %705 = vmatprep.subr.bf16.mxu0 0
    %706 = vmatpush1.bf16.msra.mxu0 0
    %707 = vmatprep.mubr.bf16.mxu0 0
    %708 = vmatmul.mubr.bf16.gmra.mrb[0].mxu0 %v603
    %v709 = vpop.f32.mrb[0].mxu0
    %v710 = vadd.f32 %v625, %v709
    %v711 = vpop.f32.mrb[0].mxu0
    %v712 = vpop.f32.mrb[0].mxu0
    %v713 = vpop.f32.mrb[0].mxu0
    %714 = vdwg.mxu0
    %vm715 = vcmp.ge.f32.partialorder %v710, 0.0
    %v716 = vmul.f32 %v710, 0.01
    %v717 = vsel %vm715, %v710, %v716
    %v718 = vpack.c.bf16 %v717, %v717
    %v719 = vld [vmem:[#allocation10] sm:$0xf]
    %v720 = vld [vmem:[#allocation10 + $0x4] sm:$0xf]
    %v721 = vld [vmem:[#allocation10 + $0x8] sm:$0xf]
    %v722 = vld [vmem:[#allocation10 + $0xc] sm:$0xf]
    %v723 = vld [vmem:[#allocation10 + $0x10] sm:$0xf]
    %v724 = vld [vmem:[#allocation10 + $0x14] sm:$0xf]
    %v725 = vld [vmem:[#allocation10 + $0x18] sm:$0xf]
    %v726 = vld [vmem:[#allocation10 + $0x1c] sm:$0xf]
    %v727 = vld [vmem:[#allocation10 + $0x20] sm:$0xf]
    %v728 = vld [vmem:[#allocation10 + $0x24] sm:$0xf]
    %v729 = vld [vmem:[#allocation10 + $0x28] sm:$0xf]
    %v730 = vld [vmem:[#allocation10 + $0x2c] sm:$0xf]
    %v731 = vld [vmem:[#allocation10 + $0x30] sm:$0xf]
    %v732 = vld [vmem:[#allocation10 + $0x34] sm:$0xf]
    %v733 = vld [vmem:[#allocation10 + $0x38] sm:$0xf]
    %v734 = vld [vmem:[#allocation10 + $0x3c] sm:$0xf]
    %v735 = vld [vmem:[%s13] sm:$0x1]
    %v737 = vlaneseq
    %v738 = vshrl.u32 %v737, 7
    %v739 = vsub.s32 0, %v738
    %v740 = vrot.slane %v735, %v739
    %v758 = vunpack.c.l.b16 %v719
    %v759 = vunpack.c.l.b16 %v720
    %v760 = vunpack.c.l.b16 %v721
    %v761 = vunpack.c.l.b16 %v722
    %v762 = vunpack.c.l.b16 %v723
    %v763 = vunpack.c.l.b16 %v724
    %v764 = vunpack.c.l.b16 %v725
    %v765 = vunpack.c.l.b16 %v726
    %v766 = vunpack.c.l.b16 %v727
    %v767 = vunpack.c.l.b16 %v728
    %v768 = vunpack.c.l.b16 %v729
    %v769 = vunpack.c.l.b16 %v730
    %v770 = vunpack.c.l.b16 %v731
    %v771 = vunpack.c.l.b16 %v732
    %v772 = vunpack.c.l.b16 %v733
    %v773 = vunpack.c.l.b16 %v734
    %v774 = vpack.c.b16 %v759, %v758
    %v775 = vpack.c.b16 %v761, %v760
    %v776 = vpack.c.b16 %v763, %v762
    %v777 = vpack.c.b16 %v765, %v764
    %v778 = vpack.c.b16 %v767, %v766
    %v779 = vpack.c.b16 %v769, %v768
    %v780 = vpack.c.b16 %v771, %v770
    %v781 = vpack.c.b16 %v773, %v772
    %790 = vmatprep.subr.bf16.mxu0 0
    %791 = vmatpush1.bf16.msra.mxu0 %v774
    %792 = vmatprep.subr.bf16.mxu0 0
    %793 = vmatpush1.bf16.msra.mxu0 %v775
    %794 = vmatprep.subr.bf16.mxu0 0
    %795 = vmatpush1.bf16.msra.mxu0 %v776
    %796 = vmatprep.subr.bf16.mxu0 0
    %797 = vmatpush1.bf16.msra.mxu0 %v777
    %798 = vmatprep.subr.bf16.mxu0 0
    %799 = vmatpush1.bf16.msra.mxu0 %v778
    %800 = vmatprep.subr.bf16.mxu0 0
    %801 = vmatpush1.bf16.msra.mxu0 %v779
    %802 = vmatprep.subr.bf16.mxu0 0
    %803 = vmatpush1.bf16.msra.mxu0 %v780
    %804 = vmatprep.subr.bf16.mxu0 0
    %805 = vmatpush1.bf16.msra.mxu0 %v781
    %806 = vmatprep.subr.bf16.mxu0 0
    %807 = vmatpush1.bf16.msra.mxu0 0
    %808 = vmatprep.subr.bf16.mxu0 0
    %809 = vmatpush1.bf16.msra.mxu0 0
    %810 = vmatprep.subr.bf16.mxu0 0
    %811 = vmatpush1.bf16.msra.mxu0 0
    %812 = vmatprep.subr.bf16.mxu0 0
    %813 = vmatpush1.bf16.msra.mxu0 0
    %814 = vmatprep.subr.bf16.mxu0 0
    %815 = vmatpush1.bf16.msra.mxu0 0
    %816 = vmatprep.subr.bf16.mxu0 0
    %817 = vmatpush1.bf16.msra.mxu0 0
    %818 = vmatprep.subr.bf16.mxu0 0
    %819 = vmatpush1.bf16.msra.mxu0 0
    %820 = vmatprep.subr.bf16.mxu0 0
    %821 = vmatpush1.bf16.msra.mxu0 0
    %822 = vmatprep.mubr.bf16.mxu0 0
    %823 = vmatmul.mubr.bf16.gmra.mrb[0].mxu0 %v718
    %v824 = vpop.f32.mrb[0].mxu0
    %v825 = vadd.f32 %v740, %v824
    %v826 = vpop.f32.mrb[0].mxu0
    %v827 = vpop.f32.mrb[0].mxu0
    %v828 = vpop.f32.mrb[0].mxu0
    %829 = vdwg.mxu0
    %830 = vst [vmem:[#allocation11] sm:$0xff] %v825
    // Predicated region
    $region78: #{categorical_ae_forward.1} parent=1 // pred_check
      _
    $region79: #{categorical_ae_forward.1} parent=1 // pred_check_branch
      %832 = sbr.rel (0) target = $region81
    $region80: #{categorical_ae_forward.1} parent=1 // pred_region
      %s834 = ssub.s32 128, 128
      %835 = vsyncadd [#allocation4], %s834
      %s837 = sshll.u32 [#allocation11], 4
      %s838 = int_to_ptr.vmem [resolvable:$true] %s837
      %840 = dma.vmem_to_hbm [thread:$0]  %s838, 128, %s14, [#allocation4]
    $region81: #{categorical_ae_forward.1} parent=1 // pred_fallthru
      _
    // Predicated region
    $region82: #{categorical_ae_forward.1} parent=1 // pred_check
      _
    $region83: #{categorical_ae_forward.1} parent=1 // pred_check_branch
      %842 = sbr.rel (0) target = $region85
    $region84: #{categorical_ae_forward.1} parent=1 // pred_region
      %s844 = ssub.s32 128, 128
      %845 = vsyncadd [#allocation13], %s844
      %s847 = sshll.u32 [#allocation12], 4
      %s848 = int_to_ptr.vmem [resolvable:$true] %s847
      %850 = dma.vmem_to_hbm [thread:$0]  %s848, 128, %s15, [#allocation13]
    $region85: #{categorical_ae_forward.1} parent=1 // pred_fallthru
      _
    // Predicated region
    $region86: #{categorical_ae_forward.1} parent=1 // pred_check
      _
    $region87: #{categorical_ae_forward.1} parent=1 // pred_check_branch
      %852 = sbr.rel (0) target = $region89
    $region88: #{categorical_ae_forward.1} parent=1 // pred_region
      %853 = dma.done [#allocation4], 128
    $region89: #{categorical_ae_forward.1} parent=1 // pred_fallthru
      _
    // Predicated region
    $region90: #{categorical_ae_forward.1} parent=1 // pred_check
      _
    $region91: #{categorical_ae_forward.1} parent=1 // pred_check_branch
      %855 = sbr.rel (0) target = $region93
    $region92: #{categorical_ae_forward.1} parent=1 // pred_region
      %856 = dma.done [#allocation13], 128
    $region93: #{categorical_ae_forward.1} parent=1 // pred_fallthru
      _
    %857 = vsyncpa [#allocation3], 1
    %858 = vsyncpa [#allocation6], 1
    %859 = vsyncpa [#allocation9], 1
    %860 = vsyncpa [#allocation4], 1
    %861 = vsyncpa [#allocation13], 1

</llo_original>
